<compile_context>
chip_gen: v6e
topology: v6e:2x2x1
jax: 0.10.0
libtpu: 0.0.40
codegen_flags: <defaults>
</compile_context>

<pallas_src>
import math

import jax
import jax.numpy as jnp
from jax import lax
from jax.experimental import pallas as pl
from jax.experimental.pallas import tpu as pltpu


def _round_up(x, m):
    return (x + m - 1) // m * m


def _choose_row_tile(n, d, itemsize):
    """Pick a row tile from D / dtype: ~4 MiB x-block, >= ~8 grid steps, 8-aligned."""
    target_block_bytes = 4 << 20                      # HBM-roofline sweet spot
    rt = target_block_bytes // max(d * itemsize, 1)
    if n >= 128:
        rt = min(rt, pl.cdiv(n, 8))                   # keep >= ~8 steps (v7x megacore)
    rt = min(rt, _round_up(n, 8))                     # never bigger than the row count
    rt = max(8, (rt // 8) * 8)                        # sublane aligned
    return int(rt)


def _vmem_limit_bytes(row_tile, d, itemsize, has_bias):
    """Explicit scoped-VMEM request derived from the chosen block sizes."""
    x_blk = row_tile * d * itemsize
    o_blk = row_tile * d * itemsize
    params = (2 if has_bias else 1) * d * itemsize
    f32_tmp = 2 * row_tile * d * 4                    # f32 cast + epilogue temporaries
    need = 2 * (x_blk + o_blk) + 2 * params + f32_tmp + (2 << 20)
    # Floor at 32 MiB (>= defaults), cap at 64 MiB (v7x physical per TC).
    return int(min(max(need, 32 << 20), 64 << 20))


def _make_rmsnorm_kernel(d, d_x, partial_size, eps, has_bias, bf16_epilogue):
    """Kernel body; d / d_x / partial_size / eps / has_bias are static."""
    inv_d_x = 1.0 / float(d_x)

    def kernel(x_ref, scale_ref, *rest):
        if has_bias:
            offset_ref, o_ref = rest
        else:
            (o_ref,) = rest

        x_in = x_ref[...]                              # (TR, D) native dtype
        x32 = x_in.astype(jnp.float32)

        # --- sum of squares, f32 accumulation --------------------------------
        if partial_size is None:
            ss = jnp.sum(x32 * x32, axis=-1, keepdims=True)
        else:
            # Only the first `partial_size` features feed the norm.  Slice to the
            # next 128-lane boundary (static, lane-aligned) and mask just that
            # boundary region; no mask needed when partial_size % 128 == 0.
            aligned = min(_round_up(partial_size, 128), d)
            xp = x32[:, :aligned]
            if partial_size == aligned:
                sq = xp * xp
            else:
                col = lax.broadcasted_iota(jnp.int32, xp.shape, 1)
                sq = jnp.where(col < partial_size, xp * xp, 0.0)
            ss = jnp.sum(sq, axis=-1, keepdims=True)

        rms = jnp.sqrt(ss * inv_d_x)                   # (TR, 1)
        inv = 1.0 / (rms + eps)                        # eps added to rms (PyTorch semantics)

        # --- epilogue ---------------------------------------------------------
        if bf16_epilogue:
            cdt = x_in.dtype                           # bf16 math: native VALU on v6e/v7x
            y = x_in * inv.astype(cdt) * scale_ref[...].astype(cdt)
            if has_bias:
                y = y + offset_ref[...].astype(cdt)
        else:
            y = x32 * inv * scale_ref[...].astype(jnp.float32)
            if has_bias:
                y = y + offset_ref[...].astype(jnp.float32)

        o_ref[...] = y.astype(o_ref.dtype)

    return kernel


def rmsnorm_forward(x, scale, offset=None, p=-1.0, eps=1e-8, row_tile=None):
    """RMSNorm over the last dim of `x`.

    x:      (..., D)
    scale:  (D,)
    offset: (D,) or None  (bias term)
    p:      partial-RMSNorm fraction, disabled outside [0, 1]
    """
    orig_shape = x.shape
    d = orig_shape[-1]
    n = math.prod(orig_shape[:-1]) if len(orig_shape) > 1 else 1
    x2 = x.reshape(n, d)

    # Static partial-RMSNorm configuration (mirrors the PyTorch module).
    if p < 0.0 or p > 1.0:
        partial_size, d_x = None, d
    else:
        partial_size = int(d * p)
        d_x = partial_size

    itemsize = jnp.dtype(x.dtype).itemsize
    if row_tile is None:
        row_tile = _choose_row_tile(n, d, itemsize)
    else:
        row_tile = max(8, (min(row_tile, _round_up(n, 8)) // 8) * 8)

    # Ragged grid: no padding, no output slice.  The final partial block's
    # out-of-bounds rows only affect themselves (per-row reduction) and their
    # writes are masked by Pallas.
    grid = pl.cdiv(n, row_tile)

    has_bias = offset is not None
    bf16_epilogue = (x.dtype == jnp.bfloat16)

    args = [x2, scale.reshape(1, d)]
    in_specs = [
        pl.BlockSpec((row_tile, d), lambda i: (i, 0)),   # x: tiled over rows
        pl.BlockSpec((1, d), lambda i: (0, 0)),          # scale: resident
    ]
    if has_bias:
        args.append(offset.reshape(1, d))
        in_specs.append(pl.BlockSpec((1, d), lambda i: (0, 0)))

    kernel = _make_rmsnorm_kernel(d, d_x, partial_size, eps, has_bias, bf16_epilogue)

    cost = pl.CostEstimate(
        flops=4 * n * d,                     # square + reduce + 2 muls per elem
        transcendentals=n,                   # one sqrt / reciprocal per row
        bytes_accessed=2 * n * d * itemsize
        + (2 if has_bias else 1) * d * itemsize,
    )

    out = pl.pallas_call(
        kernel,
        out_shape=jax.ShapeDtypeStruct((n, d), x.dtype),
        grid_spec=pltpu.PrefetchScalarGridSpec(
            num_scalar_prefetch=0,
            grid=(grid,),
            in_specs=in_specs,
            out_specs=pl.BlockSpec((row_tile, d), lambda i: (i, 0)),
        ),
        compiler_params=pltpu.CompilerParams(
            dimension_semantics=("parallel",),   # rows independent -> megacore on v7x
            vmem_limit_bytes=_vmem_limit_bytes(row_tile, d, itemsize, has_bias),
        ),
        cost_estimate=cost,
    )(*args)

    return out.reshape(orig_shape)


def rmsnorm_reference(x, scale, offset=None, p=-1.0, eps=1e-8):
    """Pure-JAX replica of the PyTorch RMSNorm.forward."""
    d = x.shape[-1]
    if p < 0.0 or p > 1.0:
        norm_x = jnp.linalg.norm(x, axis=-1, keepdims=True)
        d_x = d
    else:
        partial_size = int(d * p)
        norm_x = jnp.linalg.norm(x[..., :partial_size], axis=-1, keepdims=True)
        d_x = partial_size
    rms_x = norm_x * d_x ** (-0.5)
    x_normed = x / (rms_x + eps)
    out = scale * x_normed
    if offset is not None:
        out = out + offset
    return out


if __name__ == "__main__":
    B, S, D = 2, 8, 32
    key = jax.random.PRNGKey(0)
    k_x, k_s, k_o = jax.random.split(key, 3)

    x = jax.random.normal(k_x, (B, S, D), dtype=jnp.float32)
    # Module initializes scale=ones / offset=zeros; perturb so the test is
    # actually sensitive to the scale / offset multiplies.
    scale = 1.0 + 0.1 * jax.random.normal(k_s, (D,), dtype=jnp.float32)
    offset = 0.1 * jax.random.normal(k_o, (D,), dtype=jnp.float32)

    # 1) Default config: p=-1 (full RMSNorm), bias=False.  row_tile=8 exercises a
    #    multi-step ("parallel") grid even at this toy size.
    out = jax.block_until_ready(rmsnorm_forward(x, scale, row_tile=8))
    ref = rmsnorm_reference(x, scale)
    assert out.shape == (B, S, D)
    assert jnp.allclose(out, ref, atol=1e-5, rtol=1e-5)

    # 2) Partial RMSNorm (p=0.5) with bias — masked-norm + offset path.
    out_p = jax.block_until_ready(rmsnorm_forward(x, scale, offset=offset, p=0.5))
    ref_p = rmsnorm_reference(x, scale, offset=offset, p=0.5)
    assert jnp.allclose(out_p, ref_p, atol=1e-5, rtol=1e-5)

    # 3) Ragged grid: n % row_tile != 0 (n = 15, row_tile = 8 -> partial last block).
    x_r = jax.random.normal(jax.random.PRNGKey(1), (3, 5, D), dtype=jnp.float32)
    out_r = jax.block_until_ready(rmsnorm_forward(x_r, scale, row_tile=8))
    ref_r = rmsnorm_reference(x_r, scale)
    assert jnp.allclose(out_r, ref_r, atol=1e-5, rtol=1e-5)

    # 4) bf16 input — exercises the bf16 epilogue path (f32 accumulation kept).
    x_bf = x.astype(jnp.bfloat16)
    scale_bf = scale.astype(jnp.bfloat16)
    out_bf = jax.block_until_ready(rmsnorm_forward(x_bf, scale_bf, row_tile=8))
    ref_bf = rmsnorm_reference(x_bf.astype(jnp.float32), scale_bf.astype(jnp.float32))
    assert jnp.allclose(out_bf.astype(jnp.float32), ref_bf, atol=5e-2, rtol=5e-2)

    print("KERNEL_OK")
</pallas_src>

<mosaic_0001>
module attributes {stable_mosaic.version = 11 : i64} {
  func.func @kernel(%arg0: i32, %arg1: memref<8x32xf32, #tpu.memory_space<vmem>>, %arg2: memref<1x32xf32, #tpu.memory_space<vmem>>, %arg3: memref<8x32xf32, #tpu.memory_space<vmem>>) attributes {dimension_semantics = [#tpu.dimension_semantics<parallel>], iteration_bounds = array<i64: 2>, scalar_prefetch = 0 : i64, scratch_operands = 0 : i64, tpu.core_type = #tpu.core_type<tc>, window_params = [{transform_indices = @transform_0, window_bounds = array<i64: 8, 32>}, {pipeline_mode = #tpu.pipeline_mode<synchronous>, transform_indices = @transform_1, window_bounds = array<i64: 1, 32>}, {transform_indices = @transform_2, window_bounds = array<i64: 8, 32>}]} {
    %c0 = arith.constant 0 : index
    %c0_0 = arith.constant 0 : index
    %0 = vector.load %arg1[%c0, %c0_0] : memref<8x32xf32, #tpu.memory_space<vmem>>, vector<8x32xf32>
    %1 = arith.mulf %0, %0 : vector<8x32xf32>
    %cst = arith.constant dense<0.000000e+00> : vector<8xf32>
    %2 = vector.multi_reduction <add>, %1, %cst [1] : vector<8x32xf32> to vector<8xf32>
    %3 = vector.shape_cast %2 : vector<8xf32> to vector<8x1xf32>
    %cst_1 = arith.constant 3.125000e-02 : f32
    %4 = vector.broadcast %cst_1 : f32 to vector<8x1xf32>
    %5 = arith.mulf %3, %4 : vector<8x1xf32>
    %6 = math.sqrt %5 : vector<8x1xf32>
    %cst_2 = arith.constant 9.99999993E-9 : f32
    %7 = vector.broadcast %cst_2 : f32 to vector<8x1xf32>
    %8 = arith.addf %6, %7 : vector<8x1xf32>
    %cst_3 = arith.constant 1.000000e+00 : f32
    %9 = vector.broadcast %cst_3 : f32 to vector<8x1xf32>
    %10 = arith.divf %9, %8 : vector<8x1xf32>
    %11 = vector.broadcast %10 : vector<8x1xf32> to vector<8x32xf32>
    %12 = arith.mulf %0, %11 : vector<8x32xf32>
    %c0_4 = arith.constant 0 : index
    %c0_5 = arith.constant 0 : index
    %13 = vector.load %arg2[%c0_4, %c0_5] : memref<1x32xf32, #tpu.memory_space<vmem>>, vector<1x32xf32>
    %14 = vector.broadcast %13 : vector<1x32xf32> to vector<8x32xf32>
    %15 = arith.mulf %12, %14 : vector<8x32xf32>
    %c0_6 = arith.constant 0 : index
    %c0_7 = arith.constant 0 : index
    %16 = vector.load %arg3[%c0_6, %c0_7] : memref<8x32xf32, #tpu.memory_space<vmem>>, vector<8x32xf32>
    tpu.vector_store %arg3[%c0_6, %c0_7], %15 {strides = array<i32>} : memref<8x32xf32, #tpu.memory_space<vmem>>, vector<8x32xf32>,
    return
  }
  func.func @transform_0(%arg0: i32) -> (i32, i32) {
    %c0_i32 = arith.constant 0 : i32
    %c0_i32_0 = arith.constant 0 : i32
    return %arg0, %c0_i32 : i32, i32
  }
  func.func @transform_1(%arg0: i32) -> (i32, i32) {
    %c0_i32 = arith.constant 0 : i32
    %c0_i32_0 = arith.constant 0 : i32
    %c0_i32_1 = arith.constant 0 : i32
    return %c0_i32, %c0_i32_0 : i32, i32
  }
  func.func @transform_2(%arg0: i32) -> (i32, i32) {
    %c0_i32 = arith.constant 0 : i32
    %c0_i32_0 = arith.constant 0 : i32
    return %arg0, %c0_i32 : i32, i32
  }
}

</mosaic_0001>

<llo_original>
// kernel: tpu_custom_call.1
$region0: #{tpu_custom_call.1}
  #allocation0 [shape = 'u32[]', space=smem, size = 0x4, offset = 0x4, fixed_abs, tag = 'smem constant byte address 0x4 - core index']
  #allocation1 [shape = 'u32[144,128]{1,0:T(1,128)}', space=vmem, size = 0x12000, scoped, tag = 'internal scratch']
  %s0 = inlined_call_operand.hbm [shape: f32[16,32], index: 0, kind: input, shape index: {}]
  %s1 = inlined_call_operand.vmem [shape: f32[1,32], index: 1, kind: input, shape index: {}]
  %s2 = inlined_call_operand.hbm [shape: f32[16,32], index: 2, kind: output, shape index: {}]
  %s3 = sld [smem:[#allocation0]]
  $region45: #{tpu_custom_call.1} parent=0
    _
  %s5 = ssub.s32 1, %s3
  %s6 = scalar_select 0, %s5, %s3
  $region1: #{tpu_custom_call.1} parent=0
    #allocation2 [shape = 'u8[8192]{0}', space=vmem, size = 0x2000, scoped, tag = 'input window, operand 0']
    #allocation3 [shape = 's32[2]{0}', space=sflag, size = 0x8, scoped, tag = 'scoped memory for tpu_custom_call.1']
    #allocation4 [shape = 's32[2]{0}', space=sflag, size = 0x8, scoped, tag = 'scoped memory for tpu_custom_call.1']
    #allocation5 [shape = 'u8[8192]{0}', space=vmem, size = 0x2000, scoped, tag = 'output window, operand 0']
    %7 = vsyncpa [#allocation3], 0
    %s8 = scalar_lea.sflag [#allocation3], 1
    %9 = vsyncpa %s8, 0
    %10 = vsyncpa [#allocation4], 0
    %s11 = scalar_lea.sflag [#allocation4], 1
    %12 = vsyncpa %s11, 0
    loop: start=0, step=1, limit=4
    $region2: #{tpu_custom_call.1} parent=1 // loop_pre_header
      _
    $region3: #{tpu_custom_call.1} parent=1 // loop_header
      %s14 = sphi 0, %s18
      %p15 = scmp.ge.s32.totalorder %s14, 4
      %s24 = sphi 0, %s26
      %s27 = sphi 0, %s24
      %s28 = sphi 0, %s27
      %s44 = sphi 0, %s28
      %s48 = sphi 0, %s48
      %s50 = sphi 0, %s48
      %s51 = sphi 0, %s50
      %s65 = sphi 0, %s51
      %s71 = sphi 0, %s73
      %s74 = sphi 0, %s71
      %s75 = sphi 0, %s74
      %s91 = sphi 0, %s75
    $region4: #{tpu_custom_call.1} parent=1 // loop_header_branch
      %17 = sbr.rel (%p15) target = $region8
    $region5: #{tpu_custom_call.1} parent=1 // loop_body
      %s19 = ssub.s32 %s14, 1
      %s20 = ssub.s32 %s14, 2
      %s21 = sadd.s32 %s14, 1
      %s22 = ssub.s32 %s14, %s21
      %p23 = scmp.eq.s32.totalorder %s22, 0
      %s25 = sadd.s32 %s24, 1
      %s26 = scalar_select %p23, %s24, %s25
      %p29 = pneg %p23
      %p30 = scmp.eq.s32.totalorder %s14, 1
      %p31 = por %p29, %p30
      %p32 = scmp.ne.s32.totalorder %s24, %s27
      %p33 = scmp.eq.s32.totalorder %s14, 0
      %p34 = por %p32, %p33
      %p35 = scmp.ne.s32.totalorder %s24, %s27
      %p36 = scmp.eq.s32.totalorder %s19, 1
      %p37 = por %p35, %p36
      %p38 = scmp.ne.s32.totalorder %s27, %s28
      %p39 = scmp.eq.s32.totalorder %s19, 0
      %p40 = por %p38, %p39
      %p41 = scmp.ne.s32.totalorder %s27, %s28
      %p42 = scmp.eq.s32.totalorder %s20, 1
      %p43 = por %p41, %p42
      %p45 = scmp.ne.s32.totalorder %s28, %s44
      %p46 = scmp.eq.s32.totalorder %s20, 0
      %p47 = por %p45, %p46
      %s49 = sadd.s32 %s48, 1
      %p52 = scmp.eq.s32.totalorder %s14, 1
      %p53 = scmp.ne.s32.totalorder %s48, %s50
      %p54 = scmp.eq.s32.totalorder %s14, 0
      %p55 = por %p53, %p54
      %p56 = scmp.ne.s32.totalorder %s48, %s50
      %p57 = scmp.eq.s32.totalorder %s19, 1
      %p58 = por %p56, %p57
      %p59 = scmp.ne.s32.totalorder %s50, %s51
      %p60 = scmp.eq.s32.totalorder %s19, 0
      %p61 = por %p59, %p60
      %p62 = scmp.ne.s32.totalorder %s50, %s51
      %p63 = scmp.eq.s32.totalorder %s20, 1
      %p64 = por %p62, %p63
      %p66 = scmp.ne.s32.totalorder %s51, %s65
      %p67 = scmp.eq.s32.totalorder %s20, 0
      %p68 = por %p66, %p67
      %s69 = ssub.s32 %s14, %s21
      %p70 = scmp.eq.s32.totalorder %s69, 0
      %s72 = sadd.s32 %s71, 1
      %s73 = scalar_select %p70, %s71, %s72
      %p76 = pneg %p70
      %p77 = scmp.eq.s32.totalorder %s14, 1
      %p78 = por %p76, %p77
      %p79 = scmp.ne.s32.totalorder %s71, %s74
      %p80 = scmp.eq.s32.totalorder %s14, 0
      %p81 = por %p79, %p80
      %p82 = scmp.ne.s32.totalorder %s71, %s74
      %p83 = scmp.eq.s32.totalorder %s19, 1
      %p84 = por %p82, %p83
      %p85 = scmp.ne.s32.totalorder %s74, %s75
      %p86 = scmp.eq.s32.totalorder %s19, 0
      %p87 = por %p85, %p86
      %p88 = scmp.ne.s32.totalorder %s74, %s75
      %p89 = scmp.eq.s32.totalorder %s20, 1
      %p90 = por %p88, %p89
      %p92 = scmp.ne.s32.totalorder %s75, %s91
      %p93 = scmp.eq.s32.totalorder %s20, 0
      %p94 = por %p92, %p93
      %p95 = scmp.le.s32.totalorder 1, %s14
      %p96 = scmp.lt.s32.totalorder %s14, 3
      %p97 = pnand %p95, %p96
      %p98 = pneg %p97
      // Predicated region
      $region9: #{tpu_custom_call.1} parent=5 // pred_check
        _
      $region10: #{tpu_custom_call.1} parent=5 // pred_check_branch
        %100 = sbr.rel (%p97) target = $region12
      $region11: #{tpu_custom_call.1} parent=5 // pred_region
        %s101 = ssub.s32 %s14, 1
        // Predicated region
        $region13: #{tpu_custom_call.1} parent=11 // pred_check
          %p102 = pneg %p61
        $region14: #{tpu_custom_call.1} parent=11 // pred_check_branch
          %104 = sbr.rel (%p102) target = $region16
        $region15: #{tpu_custom_call.1} parent=11 // pred_region
          _
        $region16: #{tpu_custom_call.1} parent=11 // pred_fallthru
          _
      $region12: #{tpu_custom_call.1} parent=5 // pred_fallthru
        _
      %p105 = scmp.lt.s32.totalorder %s14, 2
      // Predicated region
      $region17: #{tpu_custom_call.1} parent=5 // pred_check
        %p106 = pneg %p105
      $region18: #{tpu_custom_call.1} parent=5 // pred_check_branch
        %108 = sbr.rel (%p106) target = $region20
      $region19: #{tpu_custom_call.1} parent=5 // pred_region
        // Predicated region
        $region21: #{tpu_custom_call.1} parent=19 // pred_check
          %p109 = pneg %p34
        $region22: #{tpu_custom_call.1} parent=19 // pred_check_branch
          %111 = sbr.rel (%p109) target = $region24
        $region23: #{tpu_custom_call.1} parent=19 // pred_region
          %s112 = sand.u32 %s24, 1
          %s113 = scalar_lea.sflag [#allocation3], %s112
          %s114 = sand.u32 %s24, 1
          %s115 = smul.addr %s114, 8
          %s116 = scalar_lea.vmem [#allocation2], %s115
          %s118 = ssub.s32 128, 128
          %119 = vsyncadd %s113, %s118
          %s120 = smul.addr %s14, 128
          %s121 = scalar_lea.hbm %s0, %s120
          %s123 = sshll.u32 %s116, 4
          %s124 = int_to_ptr.vmem [resolvable:$true] %s123
          %126 = dma.hbm_to_vmem [thread:$0]  %s121, 128, %s124, %s113
        $region24: #{tpu_custom_call.1} parent=19 // pred_fallthru
          _
      $region20: #{tpu_custom_call.1} parent=5 // pred_fallthru
        _
      %p127 = scmp.le.s32.totalorder 1, %s14
      %p128 = scmp.lt.s32.totalorder %s14, 3
      %p129 = pnand %p127, %p128
      %p130 = pneg %p129
      // Predicated region
      $region25: #{tpu_custom_call.1} parent=5 // pred_check
        _
      $region26: #{tpu_custom_call.1} parent=5 // pred_check_branch
        %132 = sbr.rel (%p129) target = $region28
      $region27: #{tpu_custom_call.1} parent=5 // pred_region
        %s133 = ssub.s32 %s14, 1
        %s134 = sand.u32 %s27, 1
        %s135 = scalar_lea.sflag [#allocation3], %s134
        %s136 = sand.u32 %s27, 1
        %s137 = smul.addr %s136, 8
        %s138 = scalar_lea.vmem [#allocation2], %s137
        // Predicated region
        $region29: #{tpu_custom_call.1} parent=27 // pred_check
          %p139 = pneg %p40
        $region30: #{tpu_custom_call.1} parent=27 // pred_check_branch
          %141 = sbr.rel (%p139) target = $region32
        $region31: #{tpu_custom_call.1} parent=27 // pred_region
          %142 = dma.done %s135, 128
        $region32: #{tpu_custom_call.1} parent=27 // pred_fallthru
          _
        %s143 = sand.u32 %s27, 1
        %s144 = scalar_lea.sflag [#allocation3], %s143
        %s145 = sand.u32 %s27, 1
        %s146 = smul.addr %s145, 8
        %s147 = scalar_lea.vmem [#allocation2], %s146
        %p148 = pneg %p40
        %p149 = pneg %p37
        %p150 = pneg %p61
        %p151 = pneg %p58
        %p152 = pneg %p87
        %p153 = pneg %p84
        %s154 = sand.u32 %s74, 1
        %s155 = scalar_lea.sflag [#allocation4], %s154
        %s156 = sand.u32 %s74, 1
        %s157 = smul.addr %s156, 8
        %s158 = scalar_lea.vmem [#allocation5], %s157
        %v159 = vld [vmem:[%s138] sm:$0xff]
        %v160 = vmul.f32 %v159, %v159
        %vm161 = vcmask 261120
        %v162 = vsel %vm161, %v160, 0.0
        %163 = vadd.xlane.f32.xlu0 %v162
        %v164 = vpop.xlane.xlu0 %163
        %v165 = vmul.f32 %v164, 0.03125
        %v166 = vrsqrt.pop %v165
        %v167 = vmul.f32 %v165, %v166
        %vm168 = vcmp.eq.f32.partialorder %v165, inf
        %v169 = vsel %vm168, %v165, %v167
        %vm170 = vcmp.eq.f32.partialorder %v165, 0.0
        %v171 = vand.u32 %v165, 2147483648
        %v172 = vsel %vm170, %v171, %v169
        %v173 = vadd.f32 %v172, 1e-08
        %v174 = vrcp.pop %v173
        %v175 = vmul.f32 1.0, %v174
        %v176 = vmul.f32 %v159, %v175
        %v177 = vld [vmem:[%s1] sm:$0x1]
        %v179 = vlaneseq
        %v180 = vshrl.u32 %v179, 7
        %v181 = vsub.s32 0, %v180
        %v182 = vrot.slane %v177, %v181
        %v184 = vmul.f32 %v176, %v182
        %185 = vst.msk [vmem:[%s158] sm:$0xff] %vm161, %v184
        %s186 = sand.u32 %s74, 1
        %s187 = scalar_lea.sflag [#allocation4], %s186
        %s188 = sand.u32 %s74, 1
        %s189 = smul.addr %s188, 8
        %s190 = scalar_lea.vmem [#allocation5], %s189
        // Predicated region
        $region33: #{tpu_custom_call.1} parent=27 // pred_check
          %p191 = pneg %p84
        $region34: #{tpu_custom_call.1} parent=27 // pred_check_branch
          %193 = sbr.rel (%p191) target = $region36
        $region35: #{tpu_custom_call.1} parent=27 // pred_region
          %s195 = ssub.s32 128, 128
          %196 = vsyncadd %s187, %s195
          %s197 = smul.addr %s19, 128
          %s198 = scalar_lea.hbm %s2, %s197
          %s200 = sshll.u32 %s190, 4
          %s201 = int_to_ptr.vmem [resolvable:$true] %s200
          %203 = dma.vmem_to_hbm [thread:$0]  %s201, 128, %s198, %s187
        $region36: #{tpu_custom_call.1} parent=27 // pred_fallthru
          _
      $region28: #{tpu_custom_call.1} parent=5 // pred_fallthru
        _
      %p204 = scmp.le.s32.totalorder 2, %s14
      // Predicated region
      $region37: #{tpu_custom_call.1} parent=5 // pred_check
        %p205 = pneg %p204
      $region38: #{tpu_custom_call.1} parent=5 // pred_check_branch
        %207 = sbr.rel (%p205) target = $region40
      $region39: #{tpu_custom_call.1} parent=5 // pred_region
        %s208 = ssub.s32 %s14, 2
        // Predicated region
        $region41: #{tpu_custom_call.1} parent=39 // pred_check
          %p209 = pneg %p90
        $region42: #{tpu_custom_call.1} parent=39 // pred_check_branch
          %211 = sbr.rel (%p209) target = $region44
        $region43: #{tpu_custom_call.1} parent=39 // pred_region
          %s212 = sand.u32 %s75, 1
          %s213 = scalar_lea.sflag [#allocation4], %s212
          %s214 = sand.u32 %s75, 1
          %s215 = smul.addr %s214, 8
          %s216 = scalar_lea.vmem [#allocation5], %s215
          %217 = dma.done %s213, 128
        $region44: #{tpu_custom_call.1} parent=39 // pred_fallthru
          _
      $region40: #{tpu_custom_call.1} parent=5 // pred_fallthru
        _
    $region6: #{tpu_custom_call.1} parent=1 // loop_footer
      %s18 = sadd.s32 1, %s14
    $region7: #{tpu_custom_call.1} parent=1 // loop_footer_branch
      %13 = sbr.rel target = $region3
    $region8: #{tpu_custom_call.1} parent=1 // loop_exit
      _
    %218 = vsyncpa [#allocation3], 1
    %s219 = scalar_lea.sflag [#allocation3], 1
    %220 = vsyncpa %s219, 1
    %221 = vsyncpa [#allocation4], 1
    %s222 = scalar_lea.sflag [#allocation4], 1
    %223 = vsyncpa %s222, 1

</llo_original>
